<compile_context>
chip_gen: v5e
topology: v5e:2x2
jax: 0.10.0
libtpu: 0.0.40
codegen_flags: <defaults>
</compile_context>

<pallas_src>
import jax
import jax.numpy as jnp
from jax import lax
from jax.experimental import pallas as pl
from jax.experimental.pallas import tpu as pltpu


def _round_up(v, m):
    return ((v + m - 1) // m) * m


def _cistrome_emb_kernel(x_ref, mt_ref, o_ref, acc_ref):
    # x_ref:  (1, TG, TD)    activation tile   (cistrome x hidden)
    # mt_ref: (Rp, TG)       pre-transposed normalized mask tile (regulator x cistrome)
    # o_ref:  (1, Rp, TD)    output tile       (regulator x hidden), resident across G axis
    # acc_ref:(Rp, TD) f32   accumulator scratch
    k = pl.program_id(2)

    @pl.when(k == 0)
    def _():
        acc_ref[...] = jnp.zeros_like(acc_ref)

    # acc[r, d] += sum_g mt[r, g] * x[g, d]   (standard contraction -> MXU, no vxpose)
    acc_ref[...] += lax.dot_general(
        mt_ref[...],
        x_ref[0],
        dimension_numbers=(((1,), (0,)), ((), ())),
        preferred_element_type=jnp.float32,
    )

    @pl.when(k == pl.num_programs(2) - 1)
    def _():
        o_ref[0] = acc_ref[...].astype(o_ref.dtype)


def cistrome_embedding_forward(x, normalized_mtx_mask, *, td_max=512, tg_max=2048):
    """out[b, r, d] = sum_g x[b, g, d] * M[g, r].

    x: (B, G, D), normalized_mtx_mask: (G, R) -> (B, R, D).
    """
    B, G, D = x.shape
    G2, R = normalized_mtx_mask.shape
    assert G == G2, "cistrome axis mismatch"

    # ---- tile sizes / padding (lane-dense output, MXU-aligned contraction) ----
    TD = min(td_max, _round_up(D, 128))        # multiple of 128 (lane dim)
    D_pad = _round_up(D, TD)
    R_pad = _round_up(R, 8)                    # f32 sublane multiple
    if G <= tg_max:
        TG = _round_up(G, 8)                   # single G block (full extent)
        G_pad = TG
    else:
        TG = tg_max                            # multiple of 128 -> tiled reduction
        G_pad = _round_up(G, TG)

    # ---- host-side prep: cast (PyTorch casts mask to x.dtype), pad, transpose once ----
    m = normalized_mtx_mask.astype(x.dtype)
    m = jnp.pad(m, ((0, G_pad - G), (0, R_pad - R)))
    m_t = m.T                                  # (R_pad, G_pad)
    x_p = jnp.pad(x, ((0, 0), (0, G_pad - G), (0, D_pad - D)))

    grid = (B, D_pad // TD, G_pad // TG)

    itemsize = jnp.dtype(x.dtype).itemsize
    cost = pl.CostEstimate(
        flops=2 * B * G * R * D,
        transcendentals=0,
        bytes_accessed=itemsize * (B * G * D + B * R * D + G * R),
    )

    # Double-buffered tiles + f32 accumulator; keep the request v7x-safe (<= 48 MiB).
    vmem_bytes = itemsize * (2 * TG * TD + 2 * R_pad * TG + 2 * R_pad * TD) + 4 * R_pad * TD
    vmem_limit = int(min(max(2 * vmem_bytes, 32 * 1024 * 1024), 48 * 1024 * 1024))

    out_p = pl.pallas_call(
        _cistrome_emb_kernel,
        out_shape=jax.ShapeDtypeStruct((B, R_pad, D_pad), x.dtype),
        grid_spec=pltpu.PrefetchScalarGridSpec(
            num_scalar_prefetch=0,
            grid=grid,
            in_specs=[
                pl.BlockSpec((1, TG, TD), lambda b, dj, k: (b, k, dj)),
                pl.BlockSpec((R_pad, TG), lambda b, dj, k: (0, k)),
            ],
            out_specs=pl.BlockSpec((1, R_pad, TD), lambda b, dj, k: (b, 0, dj)),
            scratch_shapes=[pltpu.VMEM((R_pad, TD), jnp.float32)],
        ),
        compiler_params=pltpu.CompilerParams(
            dimension_semantics=("parallel", "parallel", "arbitrary"),
            vmem_limit_bytes=vmem_limit,
        ),
        cost_estimate=cost,
    )(x_p, m_t)

    return out_p[:, :R, :D]


def make_normalized_mask(key, n_cistromes, n_regulators, dtype=jnp.float32):
    """Deterministic synthetic 0/1 mtx_mask, normalized per-regulator (column)
    by the count of nonzero entries clamped to min 1 — mirrors __init__."""
    mask = (jax.random.uniform(key, (n_cistromes, n_regulators)) > 0.5).astype(dtype)
    factor_num = jnp.sum(mask != 0, axis=0)
    normalization_factors = jnp.maximum(factor_num, 1).astype(dtype)
    return mask / normalization_factors[None, :]


if __name__ == "__main__":
    key = jax.random.PRNGKey(0)
    k_mask, k_x = jax.random.split(key)

    B, G, R, D = 2, 16, 8, 32  # batch, n_cistromes, n_regulators, hidden

    normalized_mtx_mask = make_normalized_mask(k_mask, G, R, dtype=jnp.float32)
    x = jax.random.normal(k_x, (B, G, D), dtype=jnp.float32)

    out = cistrome_embedding_forward(x, normalized_mtx_mask)
    out = jax.block_until_ready(out)

    # Reference check against plain-JAX semantics of the PyTorch forward.
    ref = jnp.einsum("bgd,gr->brd", x, normalized_mtx_mask)
    assert out.shape == (B, R, D), out.shape
    assert jnp.allclose(out, ref, atol=1e-5, rtol=1e-5), "mismatch vs reference"

    print("KERNEL_OK")
</pallas_src>

<mosaic_0001>
module attributes {stable_mosaic.version = 11 : i64} {
  func.func @_cistrome_emb_kernel(%arg0: i32, %arg1: i32, %arg2: i32, %arg3: memref<1x16x128xf32, #tpu.memory_space<vmem>>, %arg4: memref<8x16xf32, #tpu.memory_space<vmem>>, %arg5: memref<1x8x128xf32, #tpu.memory_space<vmem>>, %arg6: memref<8x128xf32, #tpu.memory_space<vmem>>) attributes {dimension_semantics = [#tpu.dimension_semantics<parallel>, #tpu.dimension_semantics<parallel>, #tpu.dimension_semantics<arbitrary>], iteration_bounds = array<i64: 2, 1, 1>, scalar_prefetch = 0 : i64, scratch_operands = 1 : i64, tpu.core_type = #tpu.core_type<tc>, window_params = [{transform_indices = @transform_0, window_bounds = array<i64: 1, 16, 128>}, {transform_indices = @transform_1, window_bounds = array<i64: 8, 16>}, {transform_indices = @transform_2, window_bounds = array<i64: 1, 8, 128>}]} {
    %c0_i32 = arith.constant 0 : i32
    %0 = arith.cmpi eq, %arg2, %c0_i32 : i32
    %1 = arith.extui %0 : i1 to i32
    %c0_i32_0 = arith.constant 0 : i32
    %2 = arith.cmpi ne, %1, %c0_i32_0 : i32
    scf.if %2 {
      %cst_11 = arith.constant 0.000000e+00 : f32
      %13 = vector.broadcast %cst_11 : f32 to vector<8x128xf32>
      %c0_12 = arith.constant 0 : index
      %c0_13 = arith.constant 0 : index
      %14 = vector.load %arg6[%c0_12, %c0_13] : memref<8x128xf32, #tpu.memory_space<vmem>>, vector<8x128xf32>
      tpu.vector_store %arg6[%c0_12, %c0_13], %13 {strides = array<i32>} : memref<8x128xf32, #tpu.memory_space<vmem>>, vector<8x128xf32>,
    } else {
    }
    %c0 = arith.constant 0 : index
    %c0_1 = arith.constant 0 : index
    %3 = vector.load %arg6[%c0, %c0_1] : memref<8x128xf32, #tpu.memory_space<vmem>>, vector<8x128xf32>
    %c0_2 = arith.constant 0 : index
    %c0_3 = arith.constant 0 : index
    %4 = vector.load %arg4[%c0_2, %c0_3] : memref<8x16xf32, #tpu.memory_space<vmem>>, vector<8x16xf32>
    %c0_4 = arith.constant 0 : index
    %c0_5 = arith.constant 0 : index
    %c0_6 = arith.constant 0 : index
    %5 = vector.load %arg3[%c0_4, %c0_5, %c0_6] : memref<1x16x128xf32, #tpu.memory_space<vmem>>, vector<1x16x128xf32>
    %6 = vector.shape_cast %5 : vector<1x16x128xf32> to vector<16x128xf32>
    %cst = arith.constant dense<0.000000e+00> : vector<8x128xf32>
    %7 = tpu.matmul %4, %6, %cst {dimension_numbers = #tpu.dot_dimension_numbers<[1], [0], [0], [1], [0, 0, 1, 1], [], []>} : vector<8x16xf32>, vector<16x128xf32>, vector<8x128xf32> -> vector<8x128xf32>
    %8 = arith.addf %3, %7 : vector<8x128xf32>
    %c0_7 = arith.constant 0 : index
    %c0_8 = arith.constant 0 : index
    %9 = vector.load %arg6[%c0_7, %c0_8] : memref<8x128xf32, #tpu.memory_space<vmem>>, vector<8x128xf32>
    tpu.vector_store %arg6[%c0_7, %c0_8], %8 {strides = array<i32>} : memref<8x128xf32, #tpu.memory_space<vmem>>, vector<8x128xf32>,
    %c0_i32_9 = arith.constant 0 : i32
    %10 = arith.cmpi eq, %arg2, %c0_i32_9 : i32
    %11 = arith.extui %10 : i1 to i32
    %c0_i32_10 = arith.constant 0 : i32
    %12 = arith.cmpi ne, %11, %c0_i32_10 : i32
    scf.if %12 {
      %c0_11 = arith.constant 0 : index
      %c0_12 = arith.constant 0 : index
      %13 = vector.load %arg6[%c0_11, %c0_12] : memref<8x128xf32, #tpu.memory_space<vmem>>, vector<8x128xf32>
      %c0_13 = arith.constant 0 : index
      %c0_14 = arith.constant 0 : index
      %c0_15 = arith.constant 0 : index
      %14 = vector.load %arg5[%c0_13, %c0_14, %c0_15] : memref<1x8x128xf32, #tpu.memory_space<vmem>>, vector<1x8x128xf32>
      %15 = vector.shape_cast %14 : vector<1x8x128xf32> to vector<8x128xf32>
      %16 = vector.shape_cast %13 : vector<8x128xf32> to vector<1x8x128xf32>
      tpu.vector_store %arg5[%c0_13, %c0_14, %c0_15], %16 {strides = array<i32>} : memref<1x8x128xf32, #tpu.memory_space<vmem>>, vector<1x8x128xf32>,
    } else {
    }
    return
  }
  func.func @transform_0(%arg0: i32, %arg1: i32, %arg2: i32) -> (i32, i32, i32) {
    %c0_i32 = arith.constant 0 : i32
    return %arg0, %arg2, %arg1 : i32, i32, i32
  }
  func.func @transform_1(%arg0: i32, %arg1: i32, %arg2: i32) -> (i32, i32) {
    %c0_i32 = arith.constant 0 : i32
    %c0_i32_0 = arith.constant 0 : i32
    return %c0_i32, %arg2 : i32, i32
  }
  func.func @transform_2(%arg0: i32, %arg1: i32, %arg2: i32) -> (i32, i32, i32) {
    %c0_i32 = arith.constant 0 : i32
    %c0_i32_0 = arith.constant 0 : i32
    return %arg0, %c0_i32, %arg1 : i32, i32, i32
  }
}

</mosaic_0001>

<llo_original>
// kernel: tpu_custom_call.1
$region0: #{tpu_custom_call.1}
  #allocation0 [shape = 'u32[]', space=smem, size = 0x4, offset = 0x4, fixed_abs, tag = 'smem constant byte address 0x4 - core index']
  #allocation1 [shape = 'u32[72,128]{1,0:T(1,128)}', space=vmem, size = 0x9000, scoped, tag = 'internal scratch']
  #allocation2 [shape = 'f32[8,128]{1,0:T(8,128)}', space=vmem, size = 0x1000, scoped, tag = 'scratch operand']
  %s0 = inlined_call_operand.hbm [shape: f32[2,16,128], index: 0, kind: input, shape index: {}]
  %s1 = inlined_call_operand.hbm [shape: f32[8,16], index: 1, kind: input, shape index: {}]
  %s2 = inlined_call_operand.hbm [shape: f32[2,8,128], index: 2, kind: output, shape index: {}]
  %s3 = sld [smem:[#allocation0]]
  $region57: #{tpu_custom_call.1} parent=0
    _
  %s5 = ssub.s32 1, %s3
  %s6 = scalar_select 0, %s5, %s3
  $region1: #{tpu_custom_call.1} parent=0
    #allocation3 [shape = 'u8[16384]{0}', space=vmem, size = 0x4000, scoped, tag = 'input window, operand 0']
    #allocation4 [shape = 's32[2]{0}', space=sflag, size = 0x8, scoped, tag = 'scoped memory for tpu_custom_call.1']
    #allocation5 [shape = 's32[2]{0}', space=sflag, size = 0x8, scoped, tag = 'scoped memory for tpu_custom_call.1']
    #allocation6 [shape = 'u8[4096]{0}', space=vmem, size = 0x1000, scoped, tag = 'input window, operand 1, single buffered']
    #allocation7 [shape = 's32[1]{0}', space=sflag, size = 0x4, scoped, tag = 'scoped memory for tpu_custom_call.1']
    #allocation8 [shape = 'u8[8192]{0}', space=vmem, size = 0x2000, scoped, tag = 'output window, operand 0']
    %7 = vsyncpa [#allocation4], 0
    %s8 = scalar_lea.sflag [#allocation4], 1
    %9 = vsyncpa %s8, 0
    %10 = vsyncpa [#allocation7], 0
    %11 = vsyncpa [#allocation5], 0
    %s12 = scalar_lea.sflag [#allocation5], 1
    %13 = vsyncpa %s12, 0
    loop: start=0, step=1, limit=4
    $region2: #{tpu_custom_call.1} parent=1 // loop_pre_header
      _
    $region3: #{tpu_custom_call.1} parent=1 // loop_header
      %s15 = sphi 0, %s19
      %p16 = scmp.ge.s32.totalorder %s15, 4
      %s22 = sphi 0, %s41
      %s23 = sphi 0, %s37
      %s24 = sphi 0, %s33
      %s25 = sphi 0, %s22
      %s26 = sphi 0, %s23
      %s27 = sphi 0, %s24
      %s28 = sphi 0, %s25
      %s29 = sphi 0, %s26
      %s30 = sphi 0, %s27
      %s48 = sphi 0, %s50
      %s51 = sphi 0, %s48
      %s52 = sphi 0, %s51
      %s68 = sphi 0, %s52
      %s74 = sphi 0, %s76
      %s77 = sphi 0, %s74
      %s78 = sphi 0, %s77
      %s94 = sphi 0, %s78
      %s102 = sphi 0, %s104
      %s105 = sphi 0, %s102
      %s106 = sphi 0, %s105
      %s122 = sphi 0, %s106
    $region4: #{tpu_custom_call.1} parent=1 // loop_header_branch
      %18 = sbr.rel (%p16) target = $region8
    $region5: #{tpu_custom_call.1} parent=1 // loop_body
      %s20 = ssub.s32 %s15, 1
      %s21 = ssub.s32 %s15, 2
      %s31 = sadd.s32 1, %s24
      %p32 = scmp.ge.s32.totalorder %s31, 1
      %s33 = scalar_select %p32, 0, %s31
      %s34 = sadd.s32 1, %s23
      %s35 = scalar_select %p32, %s34, %s23
      %p36 = scmp.ge.s32.totalorder %s35, 1
      %s37 = scalar_select %p36, 0, %s35
      %s38 = sadd.s32 1, %s22
      %s39 = scalar_select %p36, %s38, %s22
      %p40 = scmp.ge.s32.totalorder %s39, 2
      %s41 = scalar_select %p40, 0, %s39
      %s42 = ssub.s32 %s22, %s41
      %s43 = ssub.s32 %s24, %s33
      %s44 = sor.u32 %s42, %s43
      %s45 = ssub.s32 %s23, %s37
      %s46 = sor.u32 %s44, %s45
      %p47 = scmp.eq.s32.totalorder %s46, 0
      %s49 = sadd.s32 %s48, 1
      %s50 = scalar_select %p47, %s48, %s49
      %p53 = pneg %p47
      %p54 = scmp.eq.s32.totalorder %s15, 1
      %p55 = por %p53, %p54
      %p56 = scmp.ne.s32.totalorder %s48, %s51
      %p57 = scmp.eq.s32.totalorder %s15, 0
      %p58 = por %p56, %p57
      %p59 = scmp.ne.s32.totalorder %s48, %s51
      %p60 = scmp.eq.s32.totalorder %s20, 1
      %p61 = por %p59, %p60
      %p62 = scmp.ne.s32.totalorder %s51, %s52
      %p63 = scmp.eq.s32.totalorder %s20, 0
      %p64 = por %p62, %p63
      %p65 = scmp.ne.s32.totalorder %s51, %s52
      %p66 = scmp.eq.s32.totalorder %s21, 1
      %p67 = por %p65, %p66
      %p69 = scmp.ne.s32.totalorder %s52, %s68
      %p70 = scmp.eq.s32.totalorder %s21, 0
      %p71 = por %p69, %p70
      %s72 = ssub.s32 %s24, %s33
      %p73 = scmp.eq.s32.totalorder %s72, 0
      %s75 = sadd.s32 %s74, 1
      %s76 = scalar_select %p73, %s74, %s75
      %p79 = pneg %p73
      %p80 = scmp.eq.s32.totalorder %s15, 1
      %p81 = por %p79, %p80
      %p82 = scmp.ne.s32.totalorder %s74, %s77
      %p83 = scmp.eq.s32.totalorder %s15, 0
      %p84 = por %p82, %p83
      %p85 = scmp.ne.s32.totalorder %s74, %s77
      %p86 = scmp.eq.s32.totalorder %s20, 1
      %p87 = por %p85, %p86
      %p88 = scmp.ne.s32.totalorder %s77, %s78
      %p89 = scmp.eq.s32.totalorder %s20, 0
      %p90 = por %p88, %p89
      %p91 = scmp.ne.s32.totalorder %s77, %s78
      %p92 = scmp.eq.s32.totalorder %s21, 1
      %p93 = por %p91, %p92
      %p95 = scmp.ne.s32.totalorder %s78, %s94
      %p96 = scmp.eq.s32.totalorder %s21, 0
      %p97 = por %p95, %p96
      %s98 = ssub.s32 %s22, %s41
      %s99 = ssub.s32 %s23, %s37
      %s100 = sor.u32 %s98, %s99
      %p101 = scmp.eq.s32.totalorder %s100, 0
      %s103 = sadd.s32 %s102, 1
      %s104 = scalar_select %p101, %s102, %s103
      %p107 = pneg %p101
      %p108 = scmp.eq.s32.totalorder %s15, 1
      %p109 = por %p107, %p108
      %p110 = scmp.ne.s32.totalorder %s102, %s105
      %p111 = scmp.eq.s32.totalorder %s15, 0
      %p112 = por %p110, %p111
      %p113 = scmp.ne.s32.totalorder %s102, %s105
      %p114 = scmp.eq.s32.totalorder %s20, 1
      %p115 = por %p113, %p114
      %p116 = scmp.ne.s32.totalorder %s105, %s106
      %p117 = scmp.eq.s32.totalorder %s20, 0
      %p118 = por %p116, %p117
      %p119 = scmp.ne.s32.totalorder %s105, %s106
      %p120 = scmp.eq.s32.totalorder %s21, 1
      %p121 = por %p119, %p120
      %p123 = scmp.ne.s32.totalorder %s106, %s122
      %p124 = scmp.eq.s32.totalorder %s21, 0
      %p125 = por %p123, %p124
      %p126 = scmp.le.s32.totalorder 1, %s15
      %p127 = scmp.lt.s32.totalorder %s15, 3
      %p128 = pnand %p126, %p127
      %p129 = pneg %p128
      // Predicated region
      $region9: #{tpu_custom_call.1} parent=5 // pred_check
        _
      $region10: #{tpu_custom_call.1} parent=5 // pred_check_branch
        %131 = sbr.rel (%p128) target = $region12
      $region11: #{tpu_custom_call.1} parent=5 // pred_region
        %s132 = ssub.s32 %s15, 1
        // Predicated region
        $region13: #{tpu_custom_call.1} parent=11 // pred_check
          %p133 = pneg %p90
        $region14: #{tpu_custom_call.1} parent=11 // pred_check_branch
          %135 = sbr.rel (%p133) target = $region16
        $region15: #{tpu_custom_call.1} parent=11 // pred_region
          %137 = vsyncadd [#allocation7], 0
          %s138 = smul.addr %s27, 8
          %s139 = scalar_lea.hbm %s1, %s138
          %s141 = sshll.u32 %s139, 4
          %s142 = int_to_ptr.hbm [resolvable:$true] %s141
          %s143 = sshll.u32 [#allocation6], 4
          %s144 = int_to_ptr.vmem [resolvable:$true] %s143
          %146 = dma.hbm_to_vmem [thread:$0]  %s142, 128, %s144, [#allocation7]
        $region16: #{tpu_custom_call.1} parent=11 // pred_fallthru
          _
      $region12: #{tpu_custom_call.1} parent=5 // pred_fallthru
        _
      %p147 = scmp.lt.s32.totalorder %s15, 2
      // Predicated region
      $region17: #{tpu_custom_call.1} parent=5 // pred_check
        %p148 = pneg %p147
      $region18: #{tpu_custom_call.1} parent=5 // pred_check_branch
        %150 = sbr.rel (%p148) target = $region20
      $region19: #{tpu_custom_call.1} parent=5 // pred_region
        // Predicated region
        $region21: #{tpu_custom_call.1} parent=19 // pred_check
          %p151 = pneg %p58
        $region22: #{tpu_custom_call.1} parent=19 // pred_check_branch
          %153 = sbr.rel (%p151) target = $region24
        $region23: #{tpu_custom_call.1} parent=19 // pred_region
          %s154 = sand.u32 %s48, 1
          %s155 = scalar_lea.sflag [#allocation4], %s154
          %s156 = sand.u32 %s48, 1
          %s157 = smul.addr %s156, 16
          %s158 = scalar_lea.vmem [#allocation3], %s157
          %s159 = smul.u32 2, %s24
          %161 = vsyncadd %s155, 0
          %s162 = sadd.s32 %s23, %s159
          %s163 = smul.addr %s22, 2
          %s164 = sadd.s32 %s162, %s163
          %s165 = smul.addr %s164, 8
          %s166 = scalar_lea.hbm %s0, %s165
          %s167 = sshll.u32 %s166, 4
          %s168 = int_to_ptr.hbm [resolvable:$true] %s167
          %s169 = sshll.u32 %s158, 4
          %s170 = int_to_ptr.vmem [resolvable:$true] %s169
          %175 = dma.hbm_to_vmem [thread:$0]  %s168, 256, %s170, %s155, 128, 128, 8
        $region24: #{tpu_custom_call.1} parent=19 // pred_fallthru
          _
      $region20: #{tpu_custom_call.1} parent=5 // pred_fallthru
        _
      %p176 = scmp.le.s32.totalorder 1, %s15
      %p177 = scmp.lt.s32.totalorder %s15, 3
      %p178 = pnand %p176, %p177
      %p179 = pneg %p178
      // Predicated region
      $region25: #{tpu_custom_call.1} parent=5 // pred_check
        _
      $region26: #{tpu_custom_call.1} parent=5 // pred_check_branch
        %181 = sbr.rel (%p178) target = $region28
      $region27: #{tpu_custom_call.1} parent=5 // pred_region
        %s182 = ssub.s32 %s15, 1
        %s183 = sand.u32 %s51, 1
        %s184 = scalar_lea.sflag [#allocation4], %s183
        %s185 = sand.u32 %s51, 1
        %s186 = smul.addr %s185, 16
        %s187 = scalar_lea.vmem [#allocation3], %s186
        // Predicated region
        $region29: #{tpu_custom_call.1} parent=27 // pred_check
          %p188 = pneg %p64
        $region30: #{tpu_custom_call.1} parent=27 // pred_check_branch
          %190 = sbr.rel (%p188) target = $region32
        $region31: #{tpu_custom_call.1} parent=27 // pred_region
          %192 = dma.done %s184, 256
        $region32: #{tpu_custom_call.1} parent=27 // pred_fallthru
          _
        // Predicated region
        $region33: #{tpu_custom_call.1} parent=27 // pred_check
          %p193 = pneg %p90
        $region34: #{tpu_custom_call.1} parent=27 // pred_check_branch
          %195 = sbr.rel (%p193) target = $region36
        $region35: #{tpu_custom_call.1} parent=27 // pred_region
          %197 = dma.done [#allocation7], 128
        $region36: #{tpu_custom_call.1} parent=27 // pred_fallthru
          _
        %s198 = sand.u32 %s51, 1
        %s199 = scalar_lea.sflag [#allocation4], %s198
        %s200 = sand.u32 %s51, 1
        %s201 = smul.addr %s200, 16
        %s202 = scalar_lea.vmem [#allocation3], %s201
        %p203 = pneg %p64
        %p204 = pneg %p61
        %p205 = pneg %p90
        %p206 = pneg %p87
        %p207 = pneg %p118
        %p208 = pneg %p115
        %s209 = sand.u32 %s105, 1
        %s210 = scalar_lea.sflag [#allocation5], %s209
        %s211 = sand.u32 %s105, 1
        %s212 = smul.addr %s211, 8
        %s213 = scalar_lea.vmem [#allocation8], %s212
        %s214 = smul.u32 2, %s27
        %p215 = scmp.eq.s32.totalorder %s27, 0
        // Predicated region
        $region37: #{tpu_custom_call.1} parent=27 // pred_check
          %p216 = pneg %p215
        $region38: #{tpu_custom_call.1} parent=27 // pred_check_branch
          %218 = sbr.rel (%p216) target = $region40
        $region39: #{tpu_custom_call.1} parent=27 // pred_region
          %219 = vst [vmem:[#allocation2] sm:$0xff] 0.0
        $region40: #{tpu_custom_call.1} parent=27 // pred_fallthru
          _
        %v220 = vld [vmem:[#allocation2] sm:$0xff]
        %v221 = vld [vmem:[#allocation6] sm:$0xff]
        %v222 = vld [vmem:[%s187] sm:$0xff]
        %v223 = vld [vmem:[%s187 + $0x8] sm:$0xff]
        %vm224 = vcmask 130048
        %v226 = vsel %vm224, %v221, 0
        %228 = vmatpush.msra.mxu0 0.0
        %229 = vmatpush.msra.mxu0 0.0
        %230 = vmatpush.msra.mxu0 0.0
        %231 = vmatpush.msra.mxu0 0.0
        %232 = vmatpush.msra.mxu0 0.0
        %233 = vmatpush.msra.mxu0 0.0
        %234 = vmatpush.msra.mxu0 0.0
        %235 = vmatpush.msra.mxu0 0.0
        %236 = vmatpush.msra.mxu0 0.0
        %237 = vmatpush.msra.mxu0 0.0
        %238 = vmatpush.msra.mxu0 0.0
        %239 = vmatpush.msra.mxu0 0.0
        %240 = vmatpush.msra.mxu0 0.0
        %241 = vmatpush.msra.mxu0 0.0
        %242 = vmatpush.msra.mxu0 %v223
        %243 = vmatpush.msra.mxu0 %v222
        %244 = vmatmul.f32.gmra.mxu0 %v226
        %v245 = vpop.f32.mrf.mxu0
        %v246 = vadd.f32 0.0, %v245
        %247 = vdwg.mxu0
        %v248 = vadd.f32 %v220, %v246
        %249 = vst [vmem:[#allocation2] sm:$0xff] %v248
        // Predicated region
        $region41: #{tpu_custom_call.1} parent=27 // pred_check
          %p250 = pneg %p215
        $region42: #{tpu_custom_call.1} parent=27 // pred_check_branch
          %252 = sbr.rel (%p250) target = $region44
        $region43: #{tpu_custom_call.1} parent=27 // pred_region
          %v253 = vld [vmem:[#allocation2] sm:$0xff]
          %254 = vst [vmem:[%s213] sm:$0xff] %v253
        $region44: #{tpu_custom_call.1} parent=27 // pred_fallthru
          _
        %s255 = sand.u32 %s105, 1
        %s256 = scalar_lea.sflag [#allocation5], %s255
        %s257 = sand.u32 %s105, 1
        %s258 = smul.addr %s257, 8
        %s259 = scalar_lea.vmem [#allocation8], %s258
        // Predicated region
        $region45: #{tpu_custom_call.1} parent=27 // pred_check
          %p260 = pneg %p115
        $region46: #{tpu_custom_call.1} parent=27 // pred_check_branch
          %262 = sbr.rel (%p260) target = $region48
        $region47: #{tpu_custom_call.1} parent=27 // pred_region
          %264 = vsyncadd %s256, 0
          %s265 = sadd.s32 %s26, %s25
          %s266 = smul.addr %s265, 8
          %s267 = scalar_lea.hbm %s2, %s266
          %s269 = sshll.u32 %s259, 4
          %s270 = int_to_ptr.vmem [resolvable:$true] %s269
          %s271 = sshll.u32 %s267, 4
          %s272 = int_to_ptr.hbm [resolvable:$true] %s271
          %274 = dma.vmem_to_hbm [thread:$0]  %s270, 128, %s272, %s256
        $region48: #{tpu_custom_call.1} parent=27 // pred_fallthru
          _
      $region28: #{tpu_custom_call.1} parent=5 // pred_fallthru
        _
      %p275 = scmp.le.s32.totalorder 2, %s15
      // Predicated region
      $region49: #{tpu_custom_call.1} parent=5 // pred_check
        %p276 = pneg %p275
      $region50: #{tpu_custom_call.1} parent=5 // pred_check_branch
        %278 = sbr.rel (%p276) target = $region52
      $region51: #{tpu_custom_call.1} parent=5 // pred_region
        %s279 = ssub.s32 %s15, 2
        // Predicated region
        $region53: #{tpu_custom_call.1} parent=51 // pred_check
          %p280 = pneg %p121
        $region54: #{tpu_custom_call.1} parent=51 // pred_check_branch
          %282 = sbr.rel (%p280) target = $region56
        $region55: #{tpu_custom_call.1} parent=51 // pred_region
          %s283 = sand.u32 %s106, 1
          %s284 = scalar_lea.sflag [#allocation5], %s283
          %s285 = sand.u32 %s106, 1
          %s286 = smul.addr %s285, 8
          %s287 = scalar_lea.vmem [#allocation8], %s286
          %289 = dma.done %s284, 128
        $region56: #{tpu_custom_call.1} parent=51 // pred_fallthru
          _
      $region52: #{tpu_custom_call.1} parent=5 // pred_fallthru
        _
    $region6: #{tpu_custom_call.1} parent=1 // loop_footer
      %s19 = sadd.s32 1, %s15
    $region7: #{tpu_custom_call.1} parent=1 // loop_footer_branch
      %14 = sbr.rel target = $region3
    $region8: #{tpu_custom_call.1} parent=1 // loop_exit
      _
    %290 = vsyncpa [#allocation4], 1
    %s291 = scalar_lea.sflag [#allocation4], 1
    %292 = vsyncpa %s291, 1
    %293 = vsyncpa [#allocation7], 1
    %294 = vsyncpa [#allocation5], 1
    %s295 = scalar_lea.sflag [#allocation5], 1
    %296 = vsyncpa %s295, 1

</llo_original>
